<compile_context>
chip_gen: v7x
topology: tpu7x:2x2x1
jax: 0.10.0
libtpu: 0.0.40
codegen_flags: <defaults>
</compile_context>

<pallas_src>
import jax
import jax.numpy as jnp
from jax.experimental import pallas as pl
from jax.experimental.pallas import tpu as pltpu


def _round_up(x: int, m: int) -> int:
    return ((x + m - 1) // m) * m


def qnet_kernel(x_ref, w1t_ref, b1_ref, w2t_ref, b2_ref, o_ref):
    # x_ref  : (tb, 12)        batch-major, exactly as stored in HBM
    # w1t_ref: (12, hidden)    fc1 weight, pre-transposed to [in, out]
    # b1_ref : (1, hidden)     f32
    # w2t_ref: (hidden, 4)     fc2 weight, pre-transposed to [in, out]
    # b2_ref : (1, 4)          f32
    # o_ref  : (tb, 4)         f32
    h = jnp.dot(x_ref[...], w1t_ref[...], preferred_element_type=jnp.float32)
    h = jnp.maximum(h + b1_ref[...], 0.0)                       # (tb, hidden) f32
    out = jnp.dot(h.astype(w2t_ref.dtype), w2t_ref[...],
                  preferred_element_type=jnp.float32)
    o_ref[...] = (out + b2_ref[...]).astype(o_ref.dtype)        # (tb, 4)


def qnet_forward(x, w1, b1, w2, b2, *, block_b=32768, compute_dtype=None,
                 vmem_budget_bytes=40 * 1024 * 1024):
    """QNet forward: relu(x @ w1.T + b1) @ w2.T + b2.

    x : [B, 12] (f32 or bf16 -- pass bf16 from the producer for the perf path)
    w1: [hidden, 12], b1: [hidden]   (PyTorch nn.Linear layout)
    w2: [4, hidden],  b2: [4]
    returns [B, 4] float32
    """
    B, in_dim = x.shape
    hidden = w1.shape[0]
    out_dim = w2.shape[0]

    if compute_dtype is not None and x.dtype != compute_dtype:
        # NOTE: a standalone cast here is its own HBM pass; prefer producing x
        # in compute_dtype upstream.  Kept only as an opt-in knob.
        x = x.astype(compute_dtype)

    # Weights follow x's dtype for the MXU; biases / ReLU math stay f32.
    # Pre-transposing the tiny weights (<=12x10) in the wrapper is free and
    # gives the kernel two plain MXU matmuls.
    w1_t = w1.astype(x.dtype).T              # (in_dim, hidden)
    w2_t = w2.astype(x.dtype).T              # (hidden, out_dim)
    b1_2d = b1.reshape(1, hidden).astype(jnp.float32)
    b2_2d = b2.reshape(1, out_dim).astype(jnp.float32)

    # --- batch tile selection --------------------------------------------
    # VMEM cost per batch row: blocks with last dim < 128 pad to a full lane
    # tile, so an x row costs 128*itemsize and an f32 out row costs 512 B,
    # each double-buffered by the pipeline.
    row_bytes = 2 * (128 * x.dtype.itemsize + 128 * 4)
    tb_cap = max(8, (vmem_budget_bytes // row_bytes) // 8 * 8)

    tb = min(_round_up(block_b, 8), _round_up(B, 8), tb_cap)
    # v7x megacore: for big batches make sure the "parallel" axis has >= 2
    # grid steps so both TensorCores (and HBM ports) are used.
    if B >= 4096:
        tb = min(tb, _round_up(pl.cdiv(B, 2), 8))
    tb = max(tb, 8)

    grid = (pl.cdiv(B, tb),)

    # Raise scoped VMEM only when needed (v5e default is 16 MiB); 48 MiB is
    # within every generation's physical VMEM (v7x: 64 MiB).
    est_vmem = tb * row_bytes + 4 * (in_dim + hidden + out_dim + 2) * 128 * 4
    cp_kwargs = {}
    if est_vmem > 12 * 1024 * 1024:
        cp_kwargs["vmem_limit_bytes"] = 48 * 1024 * 1024

    return pl.pallas_call(
        qnet_kernel,
        out_shape=jax.ShapeDtypeStruct((B, out_dim), jnp.float32),
        grid=grid,
        in_specs=[
            # Activations: tiled along the batch axis; ragged tail is clipped
            # by Pallas (rows are independent, OOB rows never written back).
            pl.BlockSpec((tb, in_dim), lambda i: (i, 0)),
            # Weights / biases: constant index_map -> VMEM-resident.
            pl.BlockSpec((in_dim, hidden), lambda i: (0, 0)),
            pl.BlockSpec((1, hidden), lambda i: (0, 0)),
            pl.BlockSpec((hidden, out_dim), lambda i: (0, 0)),
            pl.BlockSpec((1, out_dim), lambda i: (0, 0)),
        ],
        out_specs=pl.BlockSpec((tb, out_dim), lambda i: (i, 0)),
        compiler_params=pltpu.CompilerParams(
            dimension_semantics=("parallel",), **cp_kwargs),
    )(x, w1_t, b1_2d, w2_t, b2_2d)


def init_qnet_params(key, in_dim=12, hidden_dim=10, out_dim=4):
    # PyTorch nn.Linear default init: U(-1/sqrt(fan_in), 1/sqrt(fan_in)),
    # weights stored [out, in] exactly like torch.
    k1, k2, k3, k4 = jax.random.split(key, 4)
    bound1 = 1.0 / jnp.sqrt(in_dim)
    bound2 = 1.0 / jnp.sqrt(hidden_dim)
    w1 = jax.random.uniform(k1, (hidden_dim, in_dim), jnp.float32, -bound1, bound1)
    b1 = jax.random.uniform(k2, (hidden_dim,), jnp.float32, -bound1, bound1)
    w2 = jax.random.uniform(k3, (out_dim, hidden_dim), jnp.float32, -bound2, bound2)
    b2 = jax.random.uniform(k4, (out_dim,), jnp.float32, -bound2, bound2)
    return w1, b1, w2, b2


def qnet_ref(x, w1, b1, w2, b2):
    # Plain-JAX reference, same math as the PyTorch forward.
    h = jnp.maximum(x @ w1.T + b1, 0.0)
    return h @ w2.T + b2


if __name__ == "__main__":
    key = jax.random.PRNGKey(0)
    kx, kx2, kp = jax.random.split(key, 3)

    batch, in_dim, hidden_dim, out_dim = 8, 12, 10, 4
    x = jax.random.normal(kx, (batch, in_dim), jnp.float32)
    w1, b1, w2, b2 = init_qnet_params(kp, in_dim, hidden_dim, out_dim)

    # --- small-batch f32 path (single grid step, exact match) -------------
    out = jax.block_until_ready(qnet_forward(x, w1, b1, w2, b2))
    ref = qnet_ref(x, w1, b1, w2, b2)
    assert out.shape == (batch, out_dim)
    assert jnp.allclose(out, ref, atol=1e-5, rtol=1e-5)

    # --- multi-step grid + ragged tail (B not a multiple of the tile) -----
    xb = jax.random.normal(kx2, (300, in_dim), jnp.float32)
    out_b = jax.block_until_ready(
        qnet_forward(xb, w1, b1, w2, b2, block_b=128))    # grid = (3,), ragged
    ref_b = qnet_ref(xb, w1, b1, w2, b2)
    assert out_b.shape == (300, out_dim)
    assert jnp.allclose(out_b, ref_b, atol=1e-5, rtol=1e-5)

    # --- bf16 x produced upstream (MXU-native operands, f32 accumulation) -
    out_bf16 = jax.block_until_ready(
        qnet_forward(xb.astype(jnp.bfloat16), w1, b1, w2, b2))
    assert jnp.allclose(out_bf16, ref_b, atol=5e-2, rtol=5e-2)

    print("KERNEL_OK")
</pallas_src>

<mosaic_0001>
module attributes {stable_mosaic.version = 11 : i64} {
  func.func @qnet_kernel(%arg0: i32, %arg1: memref<8x12xf32, #tpu.memory_space<vmem>>, %arg2: memref<12x10xf32, #tpu.memory_space<vmem>>, %arg3: memref<1x10xf32, #tpu.memory_space<vmem>>, %arg4: memref<10x4xf32, #tpu.memory_space<vmem>>, %arg5: memref<1x4xf32, #tpu.memory_space<vmem>>, %arg6: memref<8x4xf32, #tpu.memory_space<vmem>>) attributes {dimension_semantics = [#tpu.dimension_semantics<parallel>], iteration_bounds = array<i64: 1>, scalar_prefetch = 0 : i64, scratch_operands = 0 : i64, tpu.core_type = #tpu.core_type<tc>, window_params = [{transform_indices = @transform_0, window_bounds = array<i64: 8, 12>}, {pipeline_mode = #tpu.pipeline_mode<synchronous>, transform_indices = @transform_1, window_bounds = array<i64: 12, 10>}, {pipeline_mode = #tpu.pipeline_mode<synchronous>, transform_indices = @transform_2, window_bounds = array<i64: 1, 10>}, {pipeline_mode = #tpu.pipeline_mode<synchronous>, transform_indices = @transform_3, window_bounds = array<i64: 10, 4>}, {pipeline_mode = #tpu.pipeline_mode<synchronous>, transform_indices = @transform_4, window_bounds = array<i64: 1, 4>}, {transform_indices = @transform_5, window_bounds = array<i64: 8, 4>}]} {
    %c0 = arith.constant 0 : index
    %c0_0 = arith.constant 0 : index
    %0 = vector.load %arg1[%c0, %c0_0] : memref<8x12xf32, #tpu.memory_space<vmem>>, vector<8x12xf32>
    %c0_1 = arith.constant 0 : index
    %c0_2 = arith.constant 0 : index
    %1 = vector.load %arg2[%c0_1, %c0_2] : memref<12x10xf32, #tpu.memory_space<vmem>>, vector<12x10xf32>
    %cst = arith.constant dense<0.000000e+00> : vector<8x10xf32>
    %2 = tpu.matmul %0, %1, %cst {dimension_numbers = #tpu.dot_dimension_numbers<[1], [0], [0], [1], [0, 0, 1, 1], [], []>} : vector<8x12xf32>, vector<12x10xf32>, vector<8x10xf32> -> vector<8x10xf32>
    %c0_3 = arith.constant 0 : index
    %c0_4 = arith.constant 0 : index
    %3 = vector.load %arg3[%c0_3, %c0_4] : memref<1x10xf32, #tpu.memory_space<vmem>>, vector<1x10xf32>
    %4 = vector.broadcast %3 : vector<1x10xf32> to vector<8x10xf32>
    %5 = arith.addf %2, %4 : vector<8x10xf32>
    %cst_5 = arith.constant 0.000000e+00 : f32
    %6 = vector.broadcast %cst_5 : f32 to vector<8x10xf32>
    %7 = arith.maximumf %5, %6 : vector<8x10xf32>
    %c0_6 = arith.constant 0 : index
    %c0_7 = arith.constant 0 : index
    %8 = vector.load %arg4[%c0_6, %c0_7] : memref<10x4xf32, #tpu.memory_space<vmem>>, vector<10x4xf32>
    %cst_8 = arith.constant dense<0.000000e+00> : vector<8x4xf32>
    %9 = tpu.matmul %7, %8, %cst_8 {dimension_numbers = #tpu.dot_dimension_numbers<[1], [0], [0], [1], [0, 0, 1, 1], [], []>} : vector<8x10xf32>, vector<10x4xf32>, vector<8x4xf32> -> vector<8x4xf32>
    %c0_9 = arith.constant 0 : index
    %c0_10 = arith.constant 0 : index
    %10 = vector.load %arg5[%c0_9, %c0_10] : memref<1x4xf32, #tpu.memory_space<vmem>>, vector<1x4xf32>
    %11 = vector.broadcast %10 : vector<1x4xf32> to vector<8x4xf32>
    %12 = arith.addf %9, %11 : vector<8x4xf32>
    %c0_11 = arith.constant 0 : index
    %c0_12 = arith.constant 0 : index
    %13 = vector.load %arg6[%c0_11, %c0_12] : memref<8x4xf32, #tpu.memory_space<vmem>>, vector<8x4xf32>
    tpu.vector_store %arg6[%c0_11, %c0_12], %12 {strides = array<i32>} : memref<8x4xf32, #tpu.memory_space<vmem>>, vector<8x4xf32>,
    return
  }
  func.func @transform_0(%arg0: i32) -> (i32, i32) {
    %c0_i32 = arith.constant 0 : i32
    %c0_i32_0 = arith.constant 0 : i32
    return %arg0, %c0_i32 : i32, i32
  }
  func.func @transform_1(%arg0: i32) -> (i32, i32) {
    %c0_i32 = arith.constant 0 : i32
    %c0_i32_0 = arith.constant 0 : i32
    %c0_i32_1 = arith.constant 0 : i32
    return %c0_i32, %c0_i32_0 : i32, i32
  }
  func.func @transform_2(%arg0: i32) -> (i32, i32) {
    %c0_i32 = arith.constant 0 : i32
    %c0_i32_0 = arith.constant 0 : i32
    %c0_i32_1 = arith.constant 0 : i32
    return %c0_i32, %c0_i32_0 : i32, i32
  }
  func.func @transform_3(%arg0: i32) -> (i32, i32) {
    %c0_i32 = arith.constant 0 : i32
    %c0_i32_0 = arith.constant 0 : i32
    %c0_i32_1 = arith.constant 0 : i32
    return %c0_i32, %c0_i32_0 : i32, i32
  }
  func.func @transform_4(%arg0: i32) -> (i32, i32) {
    %c0_i32 = arith.constant 0 : i32
    %c0_i32_0 = arith.constant 0 : i32
    %c0_i32_1 = arith.constant 0 : i32
    return %c0_i32, %c0_i32_0 : i32, i32
  }
  func.func @transform_5(%arg0: i32) -> (i32, i32) {
    %c0_i32 = arith.constant 0 : i32
    %c0_i32_0 = arith.constant 0 : i32
    return %arg0, %c0_i32 : i32, i32
  }
}

</mosaic_0001>

<llo_original>
// kernel: tpu_custom_call.1
$region0: #{tpu_custom_call.1}
  #allocation0 [shape = 'u32[]', space=smem, size = 0x4, offset = 0x4, fixed_abs, tag = 'smem constant byte address 0x4 - core index']
  #allocation1 [shape = 'u32[144,128]{1,0:T(1,128)}', space=vmem, size = 0x12000, scoped, tag = 'internal scratch']
  %s0 = inlined_call_operand.hbm [shape: f32[8,12], index: 0, kind: input, shape index: {}]
  %s1 = inlined_call_operand.vmem [shape: f32[12,10], index: 1, kind: input, shape index: {}]
  %s2 = inlined_call_operand.vmem [shape: f32[1,10], index: 2, kind: input, shape index: {}]
  %s3 = inlined_call_operand.vmem [shape: f32[10,4], index: 3, kind: input, shape index: {}]
  %s4 = inlined_call_operand.vmem [shape: f32[1,4], index: 4, kind: input, shape index: {}]
  %s5 = inlined_call_operand.vmem [shape: f32[8,4], index: 5, kind: output, shape index: {}]
  %s6 = sld [smem:[#allocation0]]
  $region34: #{tpu_custom_call.1} parent=0
    _
  %s8 = ssub.s32 1, %s6
  %s9 = scalar_select 0, %s8, %s6
  $region1: #{tpu_custom_call.1} parent=0
    #allocation2 [shape = 'u8[4096]{0}', space=vmem, size = 0x1000, scoped, tag = 'input window, operand 0, single buffered']
    #allocation3 [shape = 's32[1]{0}', space=sflag, size = 0x4, scoped, tag = 'scoped memory for tpu_custom_call.1']
    %10 = vsyncpa [#allocation3], 0
    // Predicated region
    $region2: #{tpu_custom_call.1} parent=1 // pred_check
      _
    $region3: #{tpu_custom_call.1} parent=1 // pred_check_branch
      %12 = sbr.rel (0) target = $region5
    $region4: #{tpu_custom_call.1} parent=1 // pred_region
      %s14 = ssub.s32 128, 128
      %15 = vsyncadd [#allocation3], %s14
      %s17 = sshll.u32 [#allocation2], 4
      %s18 = int_to_ptr.vmem [resolvable:$true] %s17
      %20 = dma.hbm_to_vmem [thread:$0]  %s0, 128, %s18, [#allocation3]
    $region5: #{tpu_custom_call.1} parent=1 // pred_fallthru
      _
    // Predicated region
    $region6: #{tpu_custom_call.1} parent=1 // pred_check
      _
    $region7: #{tpu_custom_call.1} parent=1 // pred_check_branch
      %22 = sbr.rel (0) target = $region9
    $region8: #{tpu_custom_call.1} parent=1 // pred_region
      _
    $region9: #{tpu_custom_call.1} parent=1 // pred_fallthru
      _
    // Predicated region
    $region10: #{tpu_custom_call.1} parent=1 // pred_check
      _
    $region11: #{tpu_custom_call.1} parent=1 // pred_check_branch
      %24 = sbr.rel (0) target = $region13
    $region12: #{tpu_custom_call.1} parent=1 // pred_region
      _
    $region13: #{tpu_custom_call.1} parent=1 // pred_fallthru
      _
    // Predicated region
    $region14: #{tpu_custom_call.1} parent=1 // pred_check
      _
    $region15: #{tpu_custom_call.1} parent=1 // pred_check_branch
      %26 = sbr.rel (0) target = $region17
    $region16: #{tpu_custom_call.1} parent=1 // pred_region
      _
    $region17: #{tpu_custom_call.1} parent=1 // pred_fallthru
      _
    // Predicated region
    $region18: #{tpu_custom_call.1} parent=1 // pred_check
      _
    $region19: #{tpu_custom_call.1} parent=1 // pred_check_branch
      %28 = sbr.rel (0) target = $region21
    $region20: #{tpu_custom_call.1} parent=1 // pred_region
      _
    $region21: #{tpu_custom_call.1} parent=1 // pred_fallthru
      _
    // Predicated region
    $region22: #{tpu_custom_call.1} parent=1 // pred_check
      _
    $region23: #{tpu_custom_call.1} parent=1 // pred_check_branch
      %30 = sbr.rel (0) target = $region25
    $region24: #{tpu_custom_call.1} parent=1 // pred_region
      %31 = dma.done [#allocation3], 128
    $region25: #{tpu_custom_call.1} parent=1 // pred_fallthru
      _
    %v32 = vld [vmem:[#allocation2] sm:$0xff]
    %v33 = vld [vmem:[%s1] sm:$0xff]
    %v34 = vld [vmem:[%s1 + $0x8] sm:$0xf]
    %v35 = vld [vmem:[%s2] sm:$0x1]
    %v37 = vlaneseq
    %v38 = vshrl.u32 %v37, 7
    %v39 = vsub.s32 0, %v38
    %v40 = vrot.slane %v35, %v39
    %vm42 = vcmask 97280
    %v44 = vsel %vm42, %v32, 0
    %vm46 = vcmask 1043456
    %v48 = vsel %vm46, %v34, 0
    %50 = vmatprep.subr.mxu0 0.0
    %51 = vmatpush1.msra.mxu0 %v33
    %52 = vmatprep.subr.mxu0 0.0
    %53 = vmatpush1.msra.mxu0 %v48
    %54 = vmatprep.subr.mxu0 0.0
    %55 = vmatpush1.msra.mxu0 0.0
    %56 = vmatprep.subr.mxu0 0.0
    %57 = vmatpush1.msra.mxu0 0.0
    %58 = vmatprep.subr.mxu0 0.0
    %59 = vmatpush1.msra.mxu0 0.0
    %60 = vmatprep.subr.mxu0 0.0
    %61 = vmatpush1.msra.mxu0 0.0
    %62 = vmatprep.subr.mxu0 0.0
    %63 = vmatpush1.msra.mxu0 0.0
    %64 = vmatprep.subr.mxu0 0.0
    %65 = vmatpush1.msra.mxu0 0.0
    %66 = vmatprep.subr.mxu0 0.0
    %67 = vmatpush1.msra.mxu0 0.0
    %68 = vmatprep.subr.mxu0 0.0
    %69 = vmatpush1.msra.mxu0 0.0
    %70 = vmatprep.subr.mxu0 0.0
    %71 = vmatpush1.msra.mxu0 0.0
    %72 = vmatprep.subr.mxu0 0.0
    %73 = vmatpush1.msra.mxu0 0.0
    %74 = vmatprep.subr.mxu0 0.0
    %75 = vmatpush1.msra.mxu0 0.0
    %76 = vmatprep.subr.mxu0 0.0
    %77 = vmatpush1.msra.mxu0 0.0
    %78 = vmatprep.subr.mxu0 0.0
    %79 = vmatpush1.msra.mxu0 0.0
    %80 = vmatprep.subr.mxu0 0.0
    %81 = vmatpush1.msra.mxu0 0.0
    %82 = vmatprep.subr.mxu0 0.0
    %83 = vmatpush1.msra.mxu0 0.0
    %84 = vmatprep.subr.mxu0 0.0
    %85 = vmatpush1.msra.mxu0 0.0
    %86 = vmatprep.subr.mxu0 0.0
    %87 = vmatpush1.msra.mxu0 0.0
    %88 = vmatprep.subr.mxu0 0.0
    %89 = vmatpush1.msra.mxu0 0.0
    %90 = vmatprep.subr.mxu0 0.0
    %91 = vmatpush1.msra.mxu0 0.0
    %92 = vmatprep.subr.mxu0 0.0
    %93 = vmatpush1.msra.mxu0 0.0
    %94 = vmatprep.subr.mxu0 0.0
    %95 = vmatpush1.msra.mxu0 0.0
    %96 = vmatprep.subr.mxu0 0.0
    %97 = vmatpush1.msra.mxu0 0.0
    %98 = vmatprep.subr.mxu0 0.0
    %99 = vmatpush1.msra.mxu0 0.0
    %100 = vmatprep.subr.mxu0 0.0
    %101 = vmatpush1.msra.mxu0 0.0
    %102 = vmatprep.subr.mxu0 0.0
    %103 = vmatpush1.msra.mxu0 0.0
    %104 = vmatprep.subr.mxu0 0.0
    %105 = vmatpush1.msra.mxu0 0.0
    %106 = vmatprep.subr.mxu0 0.0
    %107 = vmatpush1.msra.mxu0 0.0
    %108 = vmatprep.subr.mxu0 0.0
    %109 = vmatpush1.msra.mxu0 0.0
    %110 = vmatprep.subr.mxu0 0.0
    %111 = vmatpush1.msra.mxu0 0.0
    %112 = vmatprep.subr.mxu0 0.0
    %113 = vmatpush1.msra.mxu0 0.0
    %114 = vmatprep.mubr.f32.mxu0 0.0
    %115 = vmatmul.mubr.f32.gmra.mrb[0].mxu0 %v44
    %v116 = vpop.f32.mrb[0].mxu0
    %v117 = vadd.f32 %v40, %v116
    %v118 = vpop.f32.mrb[0].mxu0
    %119 = vdwg.mxu0
    %v120 = vmax.f32 %v117, 0.0
    %v121 = vld [vmem:[%s3] sm:$0xff]
    %v122 = vld [vmem:[%s3 + $0x8] sm:$0x3]
    %v123 = vld [vmem:[%s4] sm:$0x1]
    %v125 = vlaneseq
    %v126 = vshrl.u32 %v125, 7
    %v127 = vsub.s32 0, %v126
    %v128 = vrot.slane %v123, %v127
    %vm130 = vcmask 80896
    %v132 = vsel %vm130, %v120, 0
    %vm134 = vcmask 1041408
    %v136 = vsel %vm134, %v122, 0
    %138 = vmatprep.subr.mxu0 0.0
    %139 = vmatpush1.msra.mxu0 %v121
    %140 = vmatprep.subr.mxu0 0.0
    %141 = vmatpush1.msra.mxu0 %v136
    %142 = vmatprep.subr.mxu0 0.0
    %143 = vmatpush1.msra.mxu0 0.0
    %144 = vmatprep.subr.mxu0 0.0
    %145 = vmatpush1.msra.mxu0 0.0
    %146 = vmatprep.subr.mxu0 0.0
    %147 = vmatpush1.msra.mxu0 0.0
    %148 = vmatprep.subr.mxu0 0.0
    %149 = vmatpush1.msra.mxu0 0.0
    %150 = vmatprep.subr.mxu0 0.0
    %151 = vmatpush1.msra.mxu0 0.0
    %152 = vmatprep.subr.mxu0 0.0
    %153 = vmatpush1.msra.mxu0 0.0
    %154 = vmatprep.subr.mxu0 0.0
    %155 = vmatpush1.msra.mxu0 0.0
    %156 = vmatprep.subr.mxu0 0.0
    %157 = vmatpush1.msra.mxu0 0.0
    %158 = vmatprep.subr.mxu0 0.0
    %159 = vmatpush1.msra.mxu0 0.0
    %160 = vmatprep.subr.mxu0 0.0
    %161 = vmatpush1.msra.mxu0 0.0
    %162 = vmatprep.subr.mxu0 0.0
    %163 = vmatpush1.msra.mxu0 0.0
    %164 = vmatprep.subr.mxu0 0.0
    %165 = vmatpush1.msra.mxu0 0.0
    %166 = vmatprep.subr.mxu0 0.0
    %167 = vmatpush1.msra.mxu0 0.0
    %168 = vmatprep.subr.mxu0 0.0
    %169 = vmatpush1.msra.mxu0 0.0
    %170 = vmatprep.subr.mxu0 0.0
    %171 = vmatpush1.msra.mxu0 0.0
    %172 = vmatprep.subr.mxu0 0.0
    %173 = vmatpush1.msra.mxu0 0.0
    %174 = vmatprep.subr.mxu0 0.0
    %175 = vmatpush1.msra.mxu0 0.0
    %176 = vmatprep.subr.mxu0 0.0
    %177 = vmatpush1.msra.mxu0 0.0
    %178 = vmatprep.subr.mxu0 0.0
    %179 = vmatpush1.msra.mxu0 0.0
    %180 = vmatprep.subr.mxu0 0.0
    %181 = vmatpush1.msra.mxu0 0.0
    %182 = vmatprep.subr.mxu0 0.0
    %183 = vmatpush1.msra.mxu0 0.0
    %184 = vmatprep.subr.mxu0 0.0
    %185 = vmatpush1.msra.mxu0 0.0
    %186 = vmatprep.subr.mxu0 0.0
    %187 = vmatpush1.msra.mxu0 0.0
    %188 = vmatprep.subr.mxu0 0.0
    %189 = vmatpush1.msra.mxu0 0.0
    %190 = vmatprep.subr.mxu0 0.0
    %191 = vmatpush1.msra.mxu0 0.0
    %192 = vmatprep.subr.mxu0 0.0
    %193 = vmatpush1.msra.mxu0 0.0
    %194 = vmatprep.subr.mxu0 0.0
    %195 = vmatpush1.msra.mxu0 0.0
    %196 = vmatprep.subr.mxu0 0.0
    %197 = vmatpush1.msra.mxu0 0.0
    %198 = vmatprep.subr.mxu0 0.0
    %199 = vmatpush1.msra.mxu0 0.0
    %200 = vmatprep.subr.mxu0 0.0
    %201 = vmatpush1.msra.mxu0 0.0
    %202 = vmatprep.mubr.f32.mxu0 0.0
    %203 = vmatmul.mubr.f32.gmra.mrb[0].mxu0 %v132
    %v204 = vpop.f32.mrb[0].mxu0
    %v205 = vadd.f32 %v128, %v204
    %v206 = vpop.f32.mrb[0].mxu0
    %207 = vdwg.mxu0
    %vm208 = vcmask 31744
    %209 = vst.msk [vmem:[%s5] sm:$0xff] %vm208, %v205
    // Predicated region
    $region26: #{tpu_custom_call.1} parent=1 // pred_check
      _
    $region27: #{tpu_custom_call.1} parent=1 // pred_check_branch
      %211 = sbr.rel (0) target = $region29
    $region28: #{tpu_custom_call.1} parent=1 // pred_region
      _
    $region29: #{tpu_custom_call.1} parent=1 // pred_fallthru
      _
    // Predicated region
    $region30: #{tpu_custom_call.1} parent=1 // pred_check
      _
    $region31: #{tpu_custom_call.1} parent=1 // pred_check_branch
      %213 = sbr.rel (0) target = $region33
    $region32: #{tpu_custom_call.1} parent=1 // pred_region
      _
    $region33: #{tpu_custom_call.1} parent=1 // pred_fallthru
      _
    %214 = vsyncpa [#allocation3], 1

</llo_original>
